<compile_context>
chip_gen: v7x
topology: tpu7x:2x2x1
jax: 0.10.0
libtpu: 0.0.40
codegen_flags: <defaults>
</compile_context>

<pallas_src>
import jax
import jax.numpy as jnp
from jax.experimental import pallas as pl
from jax.experimental.pallas import tpu as pltpu


_SAMPLES_PER_ROW = 16   # (B, 8) f32 row-major -> (B/16, 128) is a free reshape
_SLAB_ROWS = 296        # 128 (BD1) + 96 (BD2) + 64 (BD3) + 3 bias rows, padded to x8


def _cdiv(a, b):
    return -(-a // b)


def _round_up(a, b):
    return _cdiv(a, b) * b


def mlp_kernel(p_ref, x_ref, o_ref):
    """One batch tile of the 8->6->4->1 sigmoid MLP.

    p_ref: (296, 128) packed block-diagonal params (VMEM-resident, constant map).
    x_ref: (TR, 128)  16 samples per row, native (B, 8) row-major layout.
    o_ref: (TR, 16)   one output per sample, 16 samples per row.
    """
    bd1 = p_ref[0:128, 0:96]      # kron(I16, W1.T)  (128, 96)
    bd2 = p_ref[128:224, 0:64]    # kron(I16, W2.T)  (96, 64)
    bd3 = p_ref[224:288, 0:16]    # kron(I16, W3.T)  (64, 16)
    b1 = p_ref[288:289, 0:96]     # tile(b1, 16)     (1, 96)
    b2 = p_ref[289:290, 0:64]     # tile(b2, 16)     (1, 64)
    b3 = p_ref[290:291, 0:16]     # tile(b3, 16)     (1, 16)

    def sigmoid(z):
        # Mathematically identical to logistic(z); guarantees 1 EUP push/elem.
        return 0.5 * jnp.tanh(0.5 * z) + 0.5

    x = x_ref[...]                                                           # (TR, 128)
    h1 = sigmoid(jnp.dot(x, bd1, preferred_element_type=jnp.float32) + b1)   # (TR, 96)
    h2 = sigmoid(jnp.dot(h1, bd2, preferred_element_type=jnp.float32) + b2)  # (TR, 64)
    h3 = jnp.dot(h2, bd3, preferred_element_type=jnp.float32) + b3           # (TR, 16)
    o_ref[...] = sigmoid(h3)


def pack_params(params):
    """Pack torch-layout (W1,b1,W2,b2,W3,b3) into one (296, 128) block-diag slab."""
    w1, b1, w2, b2, w3, b3 = params
    eye16 = jnp.eye(_SAMPLES_PER_ROW, dtype=jnp.float32)
    bd1 = jnp.kron(eye16, w1.T.astype(jnp.float32))   # (128, 96)
    bd2 = jnp.kron(eye16, w2.T.astype(jnp.float32))   # (96, 64)
    bd3 = jnp.kron(eye16, w3.T.astype(jnp.float32))   # (64, 16)
    slab = jnp.zeros((_SLAB_ROWS, 128), jnp.float32)
    slab = slab.at[0:128, 0:96].set(bd1)
    slab = slab.at[128:224, 0:64].set(bd2)
    slab = slab.at[224:288, 0:16].set(bd3)
    slab = slab.at[288, 0:96].set(jnp.tile(b1.astype(jnp.float32), _SAMPLES_PER_ROW))
    slab = slab.at[289, 0:64].set(jnp.tile(b2.astype(jnp.float32), _SAMPLES_PER_ROW))
    slab = slab.at[290, 0:16].set(jnp.tile(b3.astype(jnp.float32), _SAMPLES_PER_ROW))
    return slab


def mymodel_forward_pallas(x, params, *, block_samples=65536):
    """Pallas kernel path.  x: (B, 8) float32 -> (B, 1) float32.

    block_samples ~64K (2 MiB x tile) is safe everywhere; ~128K is slightly
    better on v6e/v7x and still fits the explicit VMEM budget below.
    """
    B, F = x.shape
    assert F == 8, "MyModel expects 8 input features"
    x = x.astype(jnp.float32)

    rows = _cdiv(B, _SAMPLES_PER_ROW)

    # Tiling: MiB-scale tiles (amortize ~0.35 us/step overhead) but keep >= 4
    # grid steps when the batch allows (v7x megacore: 2 TCs x double buffer).
    target_rows = max(8, _round_up(int(block_samples) // _SAMPLES_PER_ROW, 8))
    num_tiles = max(_cdiv(rows, target_rows), min(4, max(1, rows // 8)))
    tile_rows = _round_up(_cdiv(rows, num_tiles), 8)
    rows_pad = num_tiles * tile_rows
    b_pad = rows_pad * _SAMPLES_PER_ROW

    # Pad only if B does not already fill the tiles (bounded; no transpose —
    # x is read in its native layout).  For peak large-B throughput, feed a
    # batch that is already a multiple of 16*tile_rows.
    if b_pad != B:
        x = jnp.pad(x, ((0, b_pad - B), (0, 0)))
    x_rows = x.reshape(rows_pad, 8 * _SAMPLES_PER_ROW)    # free contiguous reshape

    slab = pack_params(params)

    # VMEM budget: 2x double-buffered (tile_rows,128) in, 2x (tile_rows,16) out
    # (lane-padded to 128 in VMEM), resident params, elementwise temporaries.
    tile_bytes = tile_rows * 128 * 4
    vmem_limit = int(min(48 * 1024 * 1024,
                         max(32 * 1024 * 1024, int(9 * tile_bytes * 1.25))))

    cost = pl.CostEstimate(
        flops=2 * rows_pad * (128 * 96 + 96 * 64 + 64 * 16),
        transcendentals=rows_pad * (96 + 64 + 16),
        bytes_accessed=rows_pad * (128 + 16) * 4 + _SLAB_ROWS * 128 * 4,
    )

    out = pl.pallas_call(
        mlp_kernel,
        out_shape=jax.ShapeDtypeStruct((rows_pad, 16), jnp.float32),
        grid=(num_tiles,),
        in_specs=[
            pl.BlockSpec((_SLAB_ROWS, 128), lambda i: (0, 0)),   # params: resident
            pl.BlockSpec((tile_rows, 128), lambda i: (i, 0)),    # x tile, native layout
        ],
        out_specs=pl.BlockSpec((tile_rows, 16), lambda i: (i, 0)),
        compiler_params=pltpu.CompilerParams(
            dimension_semantics=("parallel",),
            vmem_limit_bytes=vmem_limit,
        ),
        cost_estimate=cost,
    )(slab, x_rows)

    return out.reshape(b_pad, 1)[:B]                      # free reshape + slice


def reference_forward(x, params):
    w1, b1, w2, b2, w3, b3 = params
    h = jax.nn.sigmoid(x @ w1.T + b1)
    h = jax.nn.sigmoid(h @ w2.T + b2)
    return jax.nn.sigmoid(h @ w3.T + b3)


def mymodel_forward(x, params, *, block_samples=65536, min_kernel_batch=16384):
    """Dispatcher: tiny batches go straight to XLA fusion (a pallas_call is
    pure overhead at batch ~8); large batches use the Pallas kernel."""
    if x.shape[0] < min_kernel_batch:
        return reference_forward(x.astype(jnp.float32), params)
    return mymodel_forward_pallas(x, params, block_samples=block_samples)


def init_params(key):
    # Deterministic init, PyTorch nn.Linear layout: weight (out, in), bias (out,).
    k1, k2, k3, k4, k5, k6 = jax.random.split(key, 6)
    w1 = jax.random.normal(k1, (6, 8), jnp.float32) * 0.5
    b1 = jax.random.normal(k2, (6,), jnp.float32) * 0.1
    w2 = jax.random.normal(k3, (4, 6), jnp.float32) * 0.5
    b2 = jax.random.normal(k4, (4,), jnp.float32) * 0.1
    w3 = jax.random.normal(k5, (1, 4), jnp.float32) * 0.5
    b3 = jax.random.normal(k6, (1,), jnp.float32) * 0.1
    return (w1, b1, w2, b2, w3, b3)


if __name__ == "__main__":
    key = jax.random.PRNGKey(0)
    kx, kp = jax.random.split(key)
    params = init_params(kp)

    # Small shapes, forcing the kernel path (min_kernel_batch=0):
    #   B=256  -> 2 even grid steps (tile_rows=8), no padding.
    #   B=300  -> ragged batch: exercises padding + multi-step grid.
    for B in (256, 300):
        x = jax.random.normal(jax.random.fold_in(kx, B), (B, 8), jnp.float32)
        out = jax.block_until_ready(
            mymodel_forward(x, params, block_samples=2048, min_kernel_batch=0))
        ref = reference_forward(x, params)
        assert out.shape == (B, 1), out.shape
        assert jnp.allclose(out, ref, atol=1e-5, rtol=1e-5), "kernel mismatch vs reference"

    # Small-batch fast path (no pallas_call) still matches the module.
    x_small = jax.random.normal(kx, (8, 8), jnp.float32)
    out_small = jax.block_until_ready(mymodel_forward(x_small, params))
    assert out_small.shape == (8, 1)
    assert jnp.allclose(out_small, reference_forward(x_small, params),
                        atol=1e-5, rtol=1e-5), "fast path mismatch vs reference"

    print("KERNEL_OK")
</pallas_src>

<mosaic_0001>
module attributes {stable_mosaic.version = 11 : i64} {
  func.func @mlp_kernel(%arg0: i32, %arg1: memref<296x128xf32, #tpu.memory_space<vmem>>, %arg2: memref<8x128xf32, #tpu.memory_space<vmem>>, %arg3: memref<8x16xf32, #tpu.memory_space<vmem>>) attributes {dimension_semantics = [#tpu.dimension_semantics<parallel>], iteration_bounds = array<i64: 2>, scalar_prefetch = 0 : i64, scratch_operands = 0 : i64, tpu.core_type = #tpu.core_type<tc>, window_params = [{pipeline_mode = #tpu.pipeline_mode<synchronous>, transform_indices = @transform_0, window_bounds = array<i64: 296, 128>}, {transform_indices = @transform_1, window_bounds = array<i64: 8, 128>}, {transform_indices = @transform_2, window_bounds = array<i64: 8, 16>}]} {
    %c0 = arith.constant 0 : index
    %c0_0 = arith.constant 0 : index
    %0 = vector.load %arg1[%c0, %c0_0] : memref<296x128xf32, #tpu.memory_space<vmem>>, vector<128x96xf32>
    %c128 = arith.constant 128 : index
    %c0_1 = arith.constant 0 : index
    %1 = vector.load %arg1[%c128, %c0_1] : memref<296x128xf32, #tpu.memory_space<vmem>>, vector<96x64xf32>
    %c224 = arith.constant 224 : index
    %c0_2 = arith.constant 0 : index
    %2 = vector.load %arg1[%c224, %c0_2] : memref<296x128xf32, #tpu.memory_space<vmem>>, vector<64x16xf32>
    %c288 = arith.constant 288 : index
    %c0_3 = arith.constant 0 : index
    %3 = vector.load %arg1[%c288, %c0_3] : memref<296x128xf32, #tpu.memory_space<vmem>>, vector<1x96xf32>
    %c289 = arith.constant 289 : index
    %c0_4 = arith.constant 0 : index
    %4 = vector.load %arg1[%c289, %c0_4] : memref<296x128xf32, #tpu.memory_space<vmem>>, vector<1x64xf32>
    %c290 = arith.constant 290 : index
    %c0_5 = arith.constant 0 : index
    %5 = vector.load %arg1[%c290, %c0_5] : memref<296x128xf32, #tpu.memory_space<vmem>>, vector<1x16xf32>
    %c0_6 = arith.constant 0 : index
    %c0_7 = arith.constant 0 : index
    %6 = vector.load %arg2[%c0_6, %c0_7] : memref<8x128xf32, #tpu.memory_space<vmem>>, vector<8x128xf32>
    %cst = arith.constant dense<0.000000e+00> : vector<8x96xf32>
    %7 = tpu.matmul %6, %0, %cst {dimension_numbers = #tpu.dot_dimension_numbers<[1], [0], [0], [1], [0, 0, 1, 1], [], []>} : vector<8x128xf32>, vector<128x96xf32>, vector<8x96xf32> -> vector<8x96xf32>
    %8 = vector.broadcast %3 : vector<1x96xf32> to vector<8x96xf32>
    %9 = arith.addf %7, %8 : vector<8x96xf32>
    %cst_8 = arith.constant 5.000000e-01 : f32
    %10 = vector.broadcast %cst_8 : f32 to vector<8x96xf32>
    %11 = arith.mulf %10, %9 : vector<8x96xf32>
    %12 = math.tanh %11 : vector<8x96xf32>
    %cst_9 = arith.constant 5.000000e-01 : f32
    %13 = vector.broadcast %cst_9 : f32 to vector<8x96xf32>
    %14 = arith.mulf %13, %12 : vector<8x96xf32>
    %cst_10 = arith.constant 5.000000e-01 : f32
    %15 = vector.broadcast %cst_10 : f32 to vector<8x96xf32>
    %16 = arith.addf %14, %15 : vector<8x96xf32>
    %cst_11 = arith.constant dense<0.000000e+00> : vector<8x64xf32>
    %17 = tpu.matmul %16, %1, %cst_11 {dimension_numbers = #tpu.dot_dimension_numbers<[1], [0], [0], [1], [0, 0, 1, 1], [], []>} : vector<8x96xf32>, vector<96x64xf32>, vector<8x64xf32> -> vector<8x64xf32>
    %18 = vector.broadcast %4 : vector<1x64xf32> to vector<8x64xf32>
    %19 = arith.addf %17, %18 : vector<8x64xf32>
    %cst_12 = arith.constant 5.000000e-01 : f32
    %20 = vector.broadcast %cst_12 : f32 to vector<8x64xf32>
    %21 = arith.mulf %20, %19 : vector<8x64xf32>
    %22 = math.tanh %21 : vector<8x64xf32>
    %cst_13 = arith.constant 5.000000e-01 : f32
    %23 = vector.broadcast %cst_13 : f32 to vector<8x64xf32>
    %24 = arith.mulf %23, %22 : vector<8x64xf32>
    %cst_14 = arith.constant 5.000000e-01 : f32
    %25 = vector.broadcast %cst_14 : f32 to vector<8x64xf32>
    %26 = arith.addf %24, %25 : vector<8x64xf32>
    %cst_15 = arith.constant dense<0.000000e+00> : vector<8x16xf32>
    %27 = tpu.matmul %26, %2, %cst_15 {dimension_numbers = #tpu.dot_dimension_numbers<[1], [0], [0], [1], [0, 0, 1, 1], [], []>} : vector<8x64xf32>, vector<64x16xf32>, vector<8x16xf32> -> vector<8x16xf32>
    %28 = vector.broadcast %5 : vector<1x16xf32> to vector<8x16xf32>
    %29 = arith.addf %27, %28 : vector<8x16xf32>
    %cst_16 = arith.constant 5.000000e-01 : f32
    %30 = vector.broadcast %cst_16 : f32 to vector<8x16xf32>
    %31 = arith.mulf %30, %29 : vector<8x16xf32>
    %32 = math.tanh %31 : vector<8x16xf32>
    %cst_17 = arith.constant 5.000000e-01 : f32
    %33 = vector.broadcast %cst_17 : f32 to vector<8x16xf32>
    %34 = arith.mulf %33, %32 : vector<8x16xf32>
    %cst_18 = arith.constant 5.000000e-01 : f32
    %35 = vector.broadcast %cst_18 : f32 to vector<8x16xf32>
    %36 = arith.addf %34, %35 : vector<8x16xf32>
    %c0_19 = arith.constant 0 : index
    %c0_20 = arith.constant 0 : index
    %37 = vector.load %arg3[%c0_19, %c0_20] : memref<8x16xf32, #tpu.memory_space<vmem>>, vector<8x16xf32>
    tpu.vector_store %arg3[%c0_19, %c0_20], %36 {strides = array<i32>} : memref<8x16xf32, #tpu.memory_space<vmem>>, vector<8x16xf32>,
    return
  }
  func.func @transform_0(%arg0: i32) -> (i32, i32) {
    %c0_i32 = arith.constant 0 : i32
    %c0_i32_0 = arith.constant 0 : i32
    %c0_i32_1 = arith.constant 0 : i32
    return %c0_i32, %c0_i32_0 : i32, i32
  }
  func.func @transform_1(%arg0: i32) -> (i32, i32) {
    %c0_i32 = arith.constant 0 : i32
    %c0_i32_0 = arith.constant 0 : i32
    return %arg0, %c0_i32 : i32, i32
  }
  func.func @transform_2(%arg0: i32) -> (i32, i32) {
    %c0_i32 = arith.constant 0 : i32
    %c0_i32_0 = arith.constant 0 : i32
    return %arg0, %c0_i32 : i32, i32
  }
}

</mosaic_0001>

<llo_original>
// kernel: tpu_custom_call.1
$region0: #{tpu_custom_call.1}
  #allocation0 [shape = 'u32[]', space=smem, size = 0x4, offset = 0x4, fixed_abs, tag = 'smem constant byte address 0x4 - core index']
  #allocation1 [shape = 'u32[144,128]{1,0:T(1,128)}', space=vmem, size = 0x12000, scoped, tag = 'internal scratch']
  %s0 = inlined_call_operand.hbm [shape: f32[296,128], index: 0, kind: input, shape index: {}]
  %s1 = inlined_call_operand.hbm [shape: f32[16,128], index: 1, kind: input, shape index: {}]
  %s2 = inlined_call_operand.hbm [shape: f32[16,16], index: 2, kind: output, shape index: {}]
  %s3 = sld [smem:[#allocation0]]
  $region49: #{tpu_custom_call.1} parent=0
    _
  %s5 = ssub.s32 1, %s3
  %s6 = scalar_select 0, %s5, %s3
  $region1: #{tpu_custom_call.1} parent=0
    #allocation2 [shape = 'u8[151552]{0}', space=vmem, size = 0x25000, scoped, tag = 'input window, operand 0, single buffered']
    #allocation3 [shape = 's32[2]{0}', space=sflag, size = 0x8, scoped, tag = 'scoped memory for tpu_custom_call.1']
    #allocation4 [shape = 's32[2]{0}', space=sflag, size = 0x8, scoped, tag = 'scoped memory for tpu_custom_call.1']
    #allocation5 [shape = 'u8[8192]{0}', space=vmem, size = 0x2000, scoped, tag = 'input window, operand 1']
    #allocation6 [shape = 's32[2]{0}', space=sflag, size = 0x8, scoped, tag = 'scoped memory for tpu_custom_call.1']
    #allocation7 [shape = 'u8[8192]{0}', space=vmem, size = 0x2000, scoped, tag = 'output window, operand 0']
    %7 = vsyncpa [#allocation3], 0
    %8 = vsyncpa [#allocation6], 0
    %s9 = scalar_lea.sflag [#allocation6], 1
    %10 = vsyncpa %s9, 0
    %11 = vsyncpa [#allocation4], 0
    %s12 = scalar_lea.sflag [#allocation4], 1
    %13 = vsyncpa %s12, 0
    loop: start=0, step=1, limit=4
    $region2: #{tpu_custom_call.1} parent=1 // loop_pre_header
      _
    $region3: #{tpu_custom_call.1} parent=1 // loop_header
      %s15 = sphi 0, %s19
      %p16 = scmp.ge.s32.totalorder %s15, 4
      %s23 = sphi 0, %s23
      %s25 = sphi 0, %s23
      %s26 = sphi 0, %s25
      %s40 = sphi 0, %s26
      %s46 = sphi 0, %s48
      %s49 = sphi 0, %s46
      %s50 = sphi 0, %s49
      %s66 = sphi 0, %s50
      %s72 = sphi 0, %s74
      %s75 = sphi 0, %s72
      %s76 = sphi 0, %s75
      %s92 = sphi 0, %s76
    $region4: #{tpu_custom_call.1} parent=1 // loop_header_branch
      %18 = sbr.rel (%p16) target = $region8
    $region5: #{tpu_custom_call.1} parent=1 // loop_body
      %s20 = ssub.s32 %s15, 1
      %s21 = ssub.s32 %s15, 2
      %s22 = sadd.s32 %s15, 1
      %s24 = sadd.s32 %s23, 1
      %p27 = scmp.eq.s32.totalorder %s15, 1
      %p28 = scmp.ne.s32.totalorder %s23, %s25
      %p29 = scmp.eq.s32.totalorder %s15, 0
      %p30 = por %p28, %p29
      %p31 = scmp.ne.s32.totalorder %s23, %s25
      %p32 = scmp.eq.s32.totalorder %s20, 1
      %p33 = por %p31, %p32
      %p34 = scmp.ne.s32.totalorder %s25, %s26
      %p35 = scmp.eq.s32.totalorder %s20, 0
      %p36 = por %p34, %p35
      %p37 = scmp.ne.s32.totalorder %s25, %s26
      %p38 = scmp.eq.s32.totalorder %s21, 1
      %p39 = por %p37, %p38
      %p41 = scmp.ne.s32.totalorder %s26, %s40
      %p42 = scmp.eq.s32.totalorder %s21, 0
      %p43 = por %p41, %p42
      %s44 = ssub.s32 %s15, %s22
      %p45 = scmp.eq.s32.totalorder %s44, 0
      %s47 = sadd.s32 %s46, 1
      %s48 = scalar_select %p45, %s46, %s47
      %p51 = pneg %p45
      %p52 = scmp.eq.s32.totalorder %s15, 1
      %p53 = por %p51, %p52
      %p54 = scmp.ne.s32.totalorder %s46, %s49
      %p55 = scmp.eq.s32.totalorder %s15, 0
      %p56 = por %p54, %p55
      %p57 = scmp.ne.s32.totalorder %s46, %s49
      %p58 = scmp.eq.s32.totalorder %s20, 1
      %p59 = por %p57, %p58
      %p60 = scmp.ne.s32.totalorder %s49, %s50
      %p61 = scmp.eq.s32.totalorder %s20, 0
      %p62 = por %p60, %p61
      %p63 = scmp.ne.s32.totalorder %s49, %s50
      %p64 = scmp.eq.s32.totalorder %s21, 1
      %p65 = por %p63, %p64
      %p67 = scmp.ne.s32.totalorder %s50, %s66
      %p68 = scmp.eq.s32.totalorder %s21, 0
      %p69 = por %p67, %p68
      %s70 = ssub.s32 %s15, %s22
      %p71 = scmp.eq.s32.totalorder %s70, 0
      %s73 = sadd.s32 %s72, 1
      %s74 = scalar_select %p71, %s72, %s73
      %p77 = pneg %p71
      %p78 = scmp.eq.s32.totalorder %s15, 1
      %p79 = por %p77, %p78
      %p80 = scmp.ne.s32.totalorder %s72, %s75
      %p81 = scmp.eq.s32.totalorder %s15, 0
      %p82 = por %p80, %p81
      %p83 = scmp.ne.s32.totalorder %s72, %s75
      %p84 = scmp.eq.s32.totalorder %s20, 1
      %p85 = por %p83, %p84
      %p86 = scmp.ne.s32.totalorder %s75, %s76
      %p87 = scmp.eq.s32.totalorder %s20, 0
      %p88 = por %p86, %p87
      %p89 = scmp.ne.s32.totalorder %s75, %s76
      %p90 = scmp.eq.s32.totalorder %s21, 1
      %p91 = por %p89, %p90
      %p93 = scmp.ne.s32.totalorder %s76, %s92
      %p94 = scmp.eq.s32.totalorder %s21, 0
      %p95 = por %p93, %p94
      %p96 = scmp.le.s32.totalorder 1, %s15
      %p97 = scmp.lt.s32.totalorder %s15, 3
      %p98 = pnand %p96, %p97
      %p99 = pneg %p98
      // Predicated region
      $region9: #{tpu_custom_call.1} parent=5 // pred_check
        _
      $region10: #{tpu_custom_call.1} parent=5 // pred_check_branch
        %101 = sbr.rel (%p98) target = $region12
      $region11: #{tpu_custom_call.1} parent=5 // pred_region
        %s102 = ssub.s32 %s15, 1
        // Predicated region
        $region13: #{tpu_custom_call.1} parent=11 // pred_check
          %p103 = pneg %p36
        $region14: #{tpu_custom_call.1} parent=11 // pred_check_branch
          %105 = sbr.rel (%p103) target = $region16
        $region15: #{tpu_custom_call.1} parent=11 // pred_region
          %s107 = ssub.s32 4736, 4736
          %108 = vsyncadd [#allocation3], %s107
          %s109 = sshll.u32 [#allocation2], 4
          %s110 = int_to_ptr.vmem [resolvable:$true] %s109
          %115 = dma.hbm_to_vmem [thread:$0]  %s0, 4736, %s110, [#allocation3], 128, 128, 8
        $region16: #{tpu_custom_call.1} parent=11 // pred_fallthru
          _
      $region12: #{tpu_custom_call.1} parent=5 // pred_fallthru
        _
      %p116 = scmp.lt.s32.totalorder %s15, 2
      // Predicated region
      $region17: #{tpu_custom_call.1} parent=5 // pred_check
        %p117 = pneg %p116
      $region18: #{tpu_custom_call.1} parent=5 // pred_check_branch
        %119 = sbr.rel (%p117) target = $region20
      $region19: #{tpu_custom_call.1} parent=5 // pred_region
        // Predicated region
        $region21: #{tpu_custom_call.1} parent=19 // pred_check
          %p120 = pneg %p56
        $region22: #{tpu_custom_call.1} parent=19 // pred_check_branch
          %122 = sbr.rel (%p120) target = $region24
        $region23: #{tpu_custom_call.1} parent=19 // pred_region
          %s123 = sand.u32 %s46, 1
          %s124 = scalar_lea.sflag [#allocation6], %s123
          %s125 = sand.u32 %s46, 1
          %s126 = smul.addr %s125, 8
          %s127 = scalar_lea.vmem [#allocation5], %s126
          %s129 = ssub.s32 128, 128
          %130 = vsyncadd %s124, %s129
          %s131 = smul.addr %s15, 128
          %s132 = scalar_lea.hbm %s1, %s131
          %s134 = sshll.u32 %s127, 4
          %s135 = int_to_ptr.vmem [resolvable:$true] %s134
          %137 = dma.hbm_to_vmem [thread:$0]  %s132, 128, %s135, %s124
        $region24: #{tpu_custom_call.1} parent=19 // pred_fallthru
          _
      $region20: #{tpu_custom_call.1} parent=5 // pred_fallthru
        _
      %p138 = scmp.le.s32.totalorder 1, %s15
      %p139 = scmp.lt.s32.totalorder %s15, 3
      %p140 = pnand %p138, %p139
      %p141 = pneg %p140
      // Predicated region
      $region25: #{tpu_custom_call.1} parent=5 // pred_check
        _
      $region26: #{tpu_custom_call.1} parent=5 // pred_check_branch
        %143 = sbr.rel (%p140) target = $region28
      $region27: #{tpu_custom_call.1} parent=5 // pred_region
        %s144 = ssub.s32 %s15, 1
        // Predicated region
        $region29: #{tpu_custom_call.1} parent=27 // pred_check
          %p145 = pneg %p36
        $region30: #{tpu_custom_call.1} parent=27 // pred_check_branch
          %147 = sbr.rel (%p145) target = $region32
        $region31: #{tpu_custom_call.1} parent=27 // pred_region
          %148 = dma.done [#allocation3], 4736
        $region32: #{tpu_custom_call.1} parent=27 // pred_fallthru
          _
        %s149 = sand.u32 %s49, 1
        %s150 = scalar_lea.sflag [#allocation6], %s149
        %s151 = sand.u32 %s49, 1
        %s152 = smul.addr %s151, 8
        %s153 = scalar_lea.vmem [#allocation5], %s152
        // Predicated region
        $region33: #{tpu_custom_call.1} parent=27 // pred_check
          %p154 = pneg %p62
        $region34: #{tpu_custom_call.1} parent=27 // pred_check_branch
          %156 = sbr.rel (%p154) target = $region36
        $region35: #{tpu_custom_call.1} parent=27 // pred_region
          %157 = dma.done %s150, 128
        $region36: #{tpu_custom_call.1} parent=27 // pred_fallthru
          _
        %p158 = pneg %p36
        %p159 = pneg %p33
        %s160 = sand.u32 %s49, 1
        %s161 = scalar_lea.sflag [#allocation6], %s160
        %s162 = sand.u32 %s49, 1
        %s163 = smul.addr %s162, 8
        %s164 = scalar_lea.vmem [#allocation5], %s163
        %p165 = pneg %p62
        %p166 = pneg %p59
        %p167 = pneg %p88
        %p168 = pneg %p85
        %s169 = sand.u32 %s75, 1
        %s170 = scalar_lea.sflag [#allocation4], %s169
        %s171 = sand.u32 %s75, 1
        %s172 = smul.addr %s171, 8
        %s173 = scalar_lea.vmem [#allocation7], %s172
        %v174 = vld [vmem:[#allocation2] sm:$0xff]
        %v175 = vld [vmem:[#allocation2 + $0x8] sm:$0xff]
        %v176 = vld [vmem:[#allocation2 + $0x10] sm:$0xff]
        %v177 = vld [vmem:[#allocation2 + $0x18] sm:$0xff]
        %v178 = vld [vmem:[#allocation2 + $0x20] sm:$0xff]
        %v179 = vld [vmem:[#allocation2 + $0x28] sm:$0xff]
        %v180 = vld [vmem:[#allocation2 + $0x30] sm:$0xff]
        %v181 = vld [vmem:[#allocation2 + $0x38] sm:$0xff]
        %v182 = vld [vmem:[#allocation2 + $0x40] sm:$0xff]
        %v183 = vld [vmem:[#allocation2 + $0x48] sm:$0xff]
        %v184 = vld [vmem:[#allocation2 + $0x50] sm:$0xff]
        %v185 = vld [vmem:[#allocation2 + $0x58] sm:$0xff]
        %v186 = vld [vmem:[#allocation2 + $0x60] sm:$0xff]
        %v187 = vld [vmem:[#allocation2 + $0x68] sm:$0xff]
        %v188 = vld [vmem:[#allocation2 + $0x70] sm:$0xff]
        %v189 = vld [vmem:[#allocation2 + $0x78] sm:$0xff]
        %v190 = vld [vmem:[#allocation2 + $0x80] sm:$0xff]
        %v191 = vld [vmem:[#allocation2 + $0x88] sm:$0xff]
        %v192 = vld [vmem:[#allocation2 + $0x90] sm:$0xff]
        %v193 = vld [vmem:[#allocation2 + $0x98] sm:$0xff]
        %v194 = vld [vmem:[#allocation2 + $0xa0] sm:$0xff]
        %v195 = vld [vmem:[#allocation2 + $0xa8] sm:$0xff]
        %v196 = vld [vmem:[#allocation2 + $0xb0] sm:$0xff]
        %v197 = vld [vmem:[#allocation2 + $0xb8] sm:$0xff]
        %v198 = vld [vmem:[#allocation2 + $0xc0] sm:$0xff]
        %v199 = vld [vmem:[#allocation2 + $0xc8] sm:$0xff]
        %v200 = vld [vmem:[#allocation2 + $0xd0] sm:$0xff]
        %v201 = vld [vmem:[#allocation2 + $0xd8] sm:$0xff]
        %v202 = vld [vmem:[#allocation2 + $0xe0] sm:$0xff]
        %v203 = vld [vmem:[#allocation2 + $0xe8] sm:$0xff]
        %v204 = vld [vmem:[#allocation2 + $0xf0] sm:$0xff]
        %v205 = vld [vmem:[#allocation2 + $0xf8] sm:$0xff]
        %v206 = vld [vmem:[#allocation2 + $0x100] sm:$0xff]
        %v207 = vld [vmem:[#allocation2 + $0x108] sm:$0xff]
        %v208 = vld [vmem:[#allocation2 + $0x110] sm:$0xff]
        %v209 = vld [vmem:[#allocation2 + $0x118] sm:$0xff]
        %v210 = vld [vmem:[#allocation2 + $0x120] sm:$0x1]
        %v211 = vld [vmem:[#allocation2 + $0x121] sm:$0x1]
        %v212 = vld [vmem:[#allocation2 + $0x122] sm:$0x1]
        %v213 = vld [vmem:[%s153] sm:$0xff]
        %v214 = vlaneseq
        %v215 = vshrl.u32 %v214, 7
        %v216 = vsub.s32 0, %v215
        %v217 = vrot.slane %v210, %v216
        %218 = vmatprep.subr.mxu0 0.0
        %219 = vmatpush1.msra.mxu0 %v174
        %220 = vmatprep.subr.mxu0 0.0
        %221 = vmatpush1.msra.mxu0 %v175
        %222 = vmatprep.subr.mxu0 0.0
        %223 = vmatpush1.msra.mxu0 %v176
        %224 = vmatprep.subr.mxu0 0.0
        %225 = vmatpush1.msra.mxu0 %v177
        %226 = vmatprep.subr.mxu0 0.0
        %227 = vmatpush1.msra.mxu0 %v178
        %228 = vmatprep.subr.mxu0 0.0
        %229 = vmatpush1.msra.mxu0 %v179
        %230 = vmatprep.subr.mxu0 0.0
        %231 = vmatpush1.msra.mxu0 %v180
        %232 = vmatprep.subr.mxu0 0.0
        %233 = vmatpush1.msra.mxu0 %v181
        %234 = vmatprep.subr.mxu0 0.0
        %235 = vmatpush1.msra.mxu0 %v182
        %236 = vmatprep.subr.mxu0 0.0
        %237 = vmatpush1.msra.mxu0 %v183
        %238 = vmatprep.subr.mxu0 0.0
        %239 = vmatpush1.msra.mxu0 %v184
        %240 = vmatprep.subr.mxu0 0.0
        %241 = vmatpush1.msra.mxu0 %v185
        %242 = vmatprep.subr.mxu0 0.0
        %243 = vmatpush1.msra.mxu0 %v186
        %244 = vmatprep.subr.mxu0 0.0
        %245 = vmatpush1.msra.mxu0 %v187
        %246 = vmatprep.subr.mxu0 0.0
        %247 = vmatpush1.msra.mxu0 %v188
        %248 = vmatprep.subr.mxu0 0.0
        %249 = vmatpush1.msra.mxu0 %v189
        %250 = vmatprep.subr.mxu0 0.0
        %251 = vmatpush1.msra.mxu0 0.0
        %252 = vmatprep.subr.mxu0 0.0
        %253 = vmatpush1.msra.mxu0 0.0
        %254 = vmatprep.subr.mxu0 0.0
        %255 = vmatpush1.msra.mxu0 0.0
        %256 = vmatprep.subr.mxu0 0.0
        %257 = vmatpush1.msra.mxu0 0.0
        %258 = vmatprep.subr.mxu0 0.0
        %259 = vmatpush1.msra.mxu0 0.0
        %260 = vmatprep.subr.mxu0 0.0
        %261 = vmatpush1.msra.mxu0 0.0
        %262 = vmatprep.subr.mxu0 0.0
        %263 = vmatpush1.msra.mxu0 0.0
        %264 = vmatprep.subr.mxu0 0.0
        %265 = vmatpush1.msra.mxu0 0.0
        %266 = vmatprep.subr.mxu0 0.0
        %267 = vmatpush1.msra.mxu0 0.0
        %268 = vmatprep.subr.mxu0 0.0
        %269 = vmatpush1.msra.mxu0 0.0
        %270 = vmatprep.subr.mxu0 0.0
        %271 = vmatpush1.msra.mxu0 0.0
        %272 = vmatprep.subr.mxu0 0.0
        %273 = vmatpush1.msra.mxu0 0.0
        %274 = vmatprep.subr.mxu0 0.0
        %275 = vmatpush1.msra.mxu0 0.0
        %276 = vmatprep.subr.mxu0 0.0
        %277 = vmatpush1.msra.mxu0 0.0
        %278 = vmatprep.subr.mxu0 0.0
        %279 = vmatpush1.msra.mxu0 0.0
        %280 = vmatprep.subr.mxu0 0.0
        %281 = vmatpush1.msra.mxu0 0.0
        %282 = vmatprep.mubr.f32.mxu0 0.0
        %283 = vmatmul.mubr.f32.gmra.mrb[0].mxu0 %v213
        %v284 = vpop.f32.mrb[0].mxu0
        %v285 = vadd.f32 %v217, %v284
        %v286 = vpop.f32.mrb[0].mxu0
        %287 = vdwg.mxu0
        %v288 = vmul.f32 %v285, 0.5
        %v289 = vtanh.pop %v288
        %v290 = vmul.f32 %v289, 0.5
        %v291 = vadd.f32 %v290, 0.5
        %v292 = vlaneseq
        %v293 = vshrl.u32 %v292, 7
        %v294 = vsub.s32 0, %v293
        %v295 = vrot.slane %v211, %v294
        %vm296 = vcmask 785408
        %v298 = vsel %vm296, %v291, 0
        %300 = vmatprep.subr.mxu0 0.0
        %301 = vmatpush1.msra.mxu0 %v190
        %302 = vmatprep.subr.mxu0 0.0
        %303 = vmatpush1.msra.mxu0 %v191
        %304 = vmatprep.subr.mxu0 0.0
        %305 = vmatpush1.msra.mxu0 %v192
        %306 = vmatprep.subr.mxu0 0.0
        %307 = vmatpush1.msra.mxu0 %v193
        %308 = vmatprep.subr.mxu0 0.0
        %309 = vmatpush1.msra.mxu0 %v194
        %310 = vmatprep.subr.mxu0 0.0
        %311 = vmatpush1.msra.mxu0 %v195
        %312 = vmatprep.subr.mxu0 0.0
        %313 = vmatpush1.msra.mxu0 %v196
        %314 = vmatprep.subr.mxu0 0.0
        %315 = vmatpush1.msra.mxu0 %v197
        %316 = vmatprep.subr.mxu0 0.0
        %317 = vmatpush1.msra.mxu0 %v198
        %318 = vmatprep.subr.mxu0 0.0
        %319 = vmatpush1.msra.mxu0 %v199
        %320 = vmatprep.subr.mxu0 0.0
        %321 = vmatpush1.msra.mxu0 %v200
        %322 = vmatprep.subr.mxu0 0.0
        %323 = vmatpush1.msra.mxu0 %v201
        %324 = vmatprep.subr.mxu0 0.0
        %325 = vmatpush1.msra.mxu0 0.0
        %326 = vmatprep.subr.mxu0 0.0
        %327 = vmatpush1.msra.mxu0 0.0
        %328 = vmatprep.subr.mxu0 0.0
        %329 = vmatpush1.msra.mxu0 0.0
        %330 = vmatprep.subr.mxu0 0.0
        %331 = vmatpush1.msra.mxu0 0.0
        %332 = vmatprep.subr.mxu0 0.0
        %333 = vmatpush1.msra.mxu0 0.0
        %334 = vmatprep.subr.mxu0 0.0
        %335 = vmatpush1.msra.mxu0 0.0
        %336 = vmatprep.subr.mxu0 0.0
        %337 = vmatpush1.msra.mxu0 0.0
        %338 = vmatprep.subr.mxu0 0.0
        %339 = vmatpush1.msra.mxu0 0.0
        %340 = vmatprep.subr.mxu0 0.0
        %341 = vmatpush1.msra.mxu0 0.0
        %342 = vmatprep.subr.mxu0 0.0
        %343 = vmatpush1.msra.mxu0 0.0
        %344 = vmatprep.subr.mxu0 0.0
        %345 = vmatpush1.msra.mxu0 0.0
        %346 = vmatprep.subr.mxu0 0.0
        %347 = vmatpush1.msra.mxu0 0.0
        %348 = vmatprep.subr.mxu0 0.0
        %349 = vmatpush1.msra.mxu0 0.0
        %350 = vmatprep.subr.mxu0 0.0
        %351 = vmatpush1.msra.mxu0 0.0
        %352 = vmatprep.subr.mxu0 0.0
        %353 = vmatpush1.msra.mxu0 0.0
        %354 = vmatprep.subr.mxu0 0.0
        %355 = vmatpush1.msra.mxu0 0.0
        %356 = vmatprep.subr.mxu0 0.0
        %357 = vmatpush1.msra.mxu0 0.0
        %358 = vmatprep.subr.mxu0 0.0
        %359 = vmatpush1.msra.mxu0 0.0
        %360 = vmatprep.subr.mxu0 0.0
        %361 = vmatpush1.msra.mxu0 0.0
        %362 = vmatprep.subr.mxu0 0.0
        %363 = vmatpush1.msra.mxu0 0.0
        %364 = vmatprep.mubr.f32.mxu0 0.0
        %365 = vmatmul.mubr.f32.gmra.mrb[0].mxu0 %v298
        %v366 = vpop.f32.mrb[0].mxu0
        %v367 = vadd.f32 %v295, %v366
        %v368 = vpop.f32.mrb[0].mxu0
        %369 = vdwg.mxu0
        %v370 = vmul.f32 %v367, 0.5
        %v371 = vtanh.pop %v370
        %v372 = vmul.f32 %v371, 0.5
        %v373 = vadd.f32 %v372, 0.5
        %v374 = vlaneseq
        %v375 = vshrl.u32 %v374, 7
        %v376 = vsub.s32 0, %v375
        %v377 = vrot.slane %v212, %v376
        %vm378 = vcmask 523264
        %v380 = vsel %vm378, %v373, 0
        %382 = vmatprep.subr.mxu0 0.0
        %383 = vmatpush1.msra.mxu0 %v202
        %384 = vmatprep.subr.mxu0 0.0
        %385 = vmatpush1.msra.mxu0 %v203
        %386 = vmatprep.subr.mxu0 0.0
        %387 = vmatpush1.msra.mxu0 %v204
        %388 = vmatprep.subr.mxu0 0.0
        %389 = vmatpush1.msra.mxu0 %v205
        %390 = vmatprep.subr.mxu0 0.0
        %391 = vmatpush1.msra.mxu0 %v206
        %392 = vmatprep.subr.mxu0 0.0
        %393 = vmatpush1.msra.mxu0 %v207
        %394 = vmatprep.subr.mxu0 0.0
        %395 = vmatpush1.msra.mxu0 %v208
        %396 = vmatprep.subr.mxu0 0.0
        %397 = vmatpush1.msra.mxu0 %v209
        %398 = vmatprep.subr.mxu0 0.0
        %399 = vmatpush1.msra.mxu0 0.0
        %400 = vmatprep.subr.mxu0 0.0
        %401 = vmatpush1.msra.mxu0 0.0
        %402 = vmatprep.subr.mxu0 0.0
        %403 = vmatpush1.msra.mxu0 0.0
        %404 = vmatprep.subr.mxu0 0.0
        %405 = vmatpush1.msra.mxu0 0.0
        %406 = vmatprep.subr.mxu0 0.0
        %407 = vmatpush1.msra.mxu0 0.0
        %408 = vmatprep.subr.mxu0 0.0
        %409 = vmatpush1.msra.mxu0 0.0
        %410 = vmatprep.subr.mxu0 0.0
        %411 = vmatpush1.msra.mxu0 0.0
        %412 = vmatprep.subr.mxu0 0.0
        %413 = vmatpush1.msra.mxu0 0.0
        %414 = vmatprep.subr.mxu0 0.0
        %415 = vmatpush1.msra.mxu0 0.0
        %416 = vmatprep.subr.mxu0 0.0
        %417 = vmatpush1.msra.mxu0 0.0
        %418 = vmatprep.subr.mxu0 0.0
        %419 = vmatpush1.msra.mxu0 0.0
        %420 = vmatprep.subr.mxu0 0.0
        %421 = vmatpush1.msra.mxu0 0.0
        %422 = vmatprep.subr.mxu0 0.0
        %423 = vmatpush1.msra.mxu0 0.0
        %424 = vmatprep.subr.mxu0 0.0
        %425 = vmatpush1.msra.mxu0 0.0
        %426 = vmatprep.subr.mxu0 0.0
        %427 = vmatpush1.msra.mxu0 0.0
        %428 = vmatprep.subr.mxu0 0.0
        %429 = vmatpush1.msra.mxu0 0.0
        %430 = vmatprep.subr.mxu0 0.0
        %431 = vmatpush1.msra.mxu0 0.0
        %432 = vmatprep.subr.mxu0 0.0
        %433 = vmatpush1.msra.mxu0 0.0
        %434 = vmatprep.subr.mxu0 0.0
        %435 = vmatpush1.msra.mxu0 0.0
        %436 = vmatprep.subr.mxu0 0.0
        %437 = vmatpush1.msra.mxu0 0.0
        %438 = vmatprep.subr.mxu0 0.0
        %439 = vmatpush1.msra.mxu0 0.0
        %440 = vmatprep.subr.mxu0 0.0
        %441 = vmatpush1.msra.mxu0 0.0
        %442 = vmatprep.subr.mxu0 0.0
        %443 = vmatpush1.msra.mxu0 0.0
        %444 = vmatprep.subr.mxu0 0.0
        %445 = vmatpush1.msra.mxu0 0.0
        %446 = vmatprep.mubr.f32.mxu0 0.0
        %447 = vmatmul.mubr.f32.gmra.mrb[0].mxu0 %v380
        %v448 = vpop.f32.mrb[0].mxu0
        %v449 = vadd.f32 %v377, %v448
        %v450 = vpop.f32.mrb[0].mxu0
        %451 = vdwg.mxu0
        %v452 = vmul.f32 %v449, 0.5
        %v453 = vtanh.pop %v452
        %v454 = vmul.f32 %v453, 0.5
        %v455 = vadd.f32 %v454, 0.5
        %vm456 = vcmask 130048
        %457 = vst.msk [vmem:[%s173] sm:$0xff] %vm456, %v455
        %s458 = sand.u32 %s75, 1
        %s459 = scalar_lea.sflag [#allocation4], %s458
        %s460 = sand.u32 %s75, 1
        %s461 = smul.addr %s460, 8
        %s462 = scalar_lea.vmem [#allocation7], %s461
        // Predicated region
        $region37: #{tpu_custom_call.1} parent=27 // pred_check
          %p463 = pneg %p85
        $region38: #{tpu_custom_call.1} parent=27 // pred_check_branch
          %465 = sbr.rel (%p463) target = $region40
        $region39: #{tpu_custom_call.1} parent=27 // pred_region
          %s467 = ssub.s32 128, 128
          %468 = vsyncadd %s459, %s467
          %s469 = smul.addr %s20, 128
          %s470 = scalar_lea.hbm %s2, %s469
          %s472 = sshll.u32 %s462, 4
          %s473 = int_to_ptr.vmem [resolvable:$true] %s472
          %475 = dma.vmem_to_hbm [thread:$0]  %s473, 128, %s470, %s459
        $region40: #{tpu_custom_call.1} parent=27 // pred_fallthru
          _
      $region28: #{tpu_custom_call.1} parent=5 // pred_fallthru
        _
      %p476 = scmp.le.s32.totalorder 2, %s15
      // Predicated region
      $region41: #{tpu_custom_call.1} parent=5 // pred_check
        %p477 = pneg %p476
      $region42: #{tpu_custom_call.1} parent=5 // pred_check_branch
        %479 = sbr.rel (%p477) target = $region44
      $region43: #{tpu_custom_call.1} parent=5 // pred_region
        %s480 = ssub.s32 %s15, 2
        // Predicated region
        $region45: #{tpu_custom_call.1} parent=43 // pred_check
          %p481 = pneg %p91
        $region46: #{tpu_custom_call.1} parent=43 // pred_check_branch
          %483 = sbr.rel (%p481) target = $region48
        $region47: #{tpu_custom_call.1} parent=43 // pred_region
          %s484 = sand.u32 %s76, 1
          %s485 = scalar_lea.sflag [#allocation4], %s484
          %s486 = sand.u32 %s76, 1
          %s487 = smul.addr %s486, 8
          %s488 = scalar_lea.vmem [#allocation7], %s487
          %489 = dma.done %s485, 128
        $region48: #{tpu_custom_call.1} parent=43 // pred_fallthru
          _
      $region44: #{tpu_custom_call.1} parent=5 // pred_fallthru
        _
    $region6: #{tpu_custom_call.1} parent=1 // loop_footer
      %s19 = sadd.s32 1, %s15
    $region7: #{tpu_custom_call.1} parent=1 // loop_footer_branch
      %14 = sbr.rel target = $region3
    $region8: #{tpu_custom_call.1} parent=1 // loop_exit
      _
    %490 = vsyncpa [#allocation3], 1
    %s491 = scalar_lea.sflag [#allocation3], 1
    %492 = vsyncpa %s491, 1
    %493 = vsyncpa [#allocation6], 1
    %s494 = scalar_lea.sflag [#allocation6], 1
    %495 = vsyncpa %s494, 1
    %496 = vsyncpa [#allocation4], 1
    %s497 = scalar_lea.sflag [#allocation4], 1
    %498 = vsyncpa %s497, 1

</llo_original>
